<compile_context>
chip_gen: v7x
topology: tpu7x:2x2x1
jax: 0.10.0
libtpu: 0.0.40
codegen_flags: <defaults>
</compile_context>

<pallas_src>
import functools

import jax
import jax.numpy as jnp
from jax.experimental import pallas as pl
from jax.experimental.pallas import tpu as pltpu

LANE = 128  # pad every feature dim to the lane width -> lane-dense loads/stores


def _round_up(n: int, m: int) -> int:
    return ((n + m - 1) // m) * m


def _fused_mlp_kernel(x_ref, w_ref, b_ref, o_ref, *, n_layers: int):
    """Fused MLP: x -> [Linear + ReLU] * (n_layers-1) -> Linear.

    x_ref: (B, D) f32 activations (D = padded feature width, multiple of 128).
    w_ref: (n_layers, D, D) bf16 packed, zero-padded weights.
    b_ref: (n_layers, D)    f32  packed, zero-padded biases.
    o_ref: (B, D) f32 lane-dense output (caller slices real columns outside).
    Intermediate activations live entirely in vregs; matmuls run on the MXU in
    bf16 with f32 accumulation, elementwise work stays f32.
    """
    h = x_ref[...]  # (B, D) f32
    for layer in range(n_layers):
        w = w_ref[layer]                    # (D, D) bf16, static leading-axis index
        b = b_ref[layer:layer + 1, :]       # (1, D) f32 -> sublane-broadcast add
        h = jnp.dot(h.astype(w.dtype), w, preferred_element_type=jnp.float32) + b
        if layer < n_layers - 1:            # final (output) layer has no ReLU
            h = jnp.maximum(h, 0.0)
    o_ref[...] = h.astype(o_ref.dtype)


def fused_mlp(x_pad, w_packed, b_packed, n_layers: int):
    """Runs the whole MLP in a single grid-less pallas_call (3 VMEM inputs)."""
    batch, d_pad = x_pad.shape
    flops = 2 * batch * n_layers * d_pad * d_pad
    bytes_accessed = (x_pad.size * 4 + w_packed.size * 2 + b_packed.size * 4
                      + batch * d_pad * 4)

    kernel = functools.partial(_fused_mlp_kernel, n_layers=n_layers)
    return pl.pallas_call(
        kernel,
        out_shape=jax.ShapeDtypeStruct((batch, d_pad), jnp.float32),
        in_specs=[pl.BlockSpec(memory_space=pltpu.MemorySpace.VMEM)] * 3,
        out_specs=pl.BlockSpec(memory_space=pltpu.MemorySpace.VMEM),
        compiler_params=pltpu.CompilerParams(vmem_limit_bytes=4 * 1024 * 1024),
        cost_estimate=pl.CostEstimate(
            flops=flops, transcendentals=0, bytes_accessed=bytes_accessed),
    )(x_pad, w_packed, b_packed)


class CustomModelPallas:
    """JAX/Pallas port of the PyTorch CustomModel MLP.

    forward: relu(Linear_in(x)) -> [relu(Linear_h(x)) ...] -> Linear_out(x),
    executed as a single fused Pallas kernel with packed, lane-padded params.
    """

    def __init__(self, input_size: int, output_size: int, hidden_sizes: list, key):
        sizes = [input_size] + list(hidden_sizes) + [output_size]
        self.input_size = input_size
        self.output_size = output_size
        self.n_layers = len(sizes) - 1
        # Uniform padded square per layer (all dims here are <= 128).
        self.d_pad = _round_up(max(sizes), LANE)

        self.params = []  # unpadded f32 (w, b) — kept for the reference check
        w_packed = jnp.zeros((self.n_layers, self.d_pad, self.d_pad), jnp.float32)
        b_packed = jnp.zeros((self.n_layers, self.d_pad), jnp.float32)
        for i in range(self.n_layers):
            fan_in, fan_out = sizes[i], sizes[i + 1]
            key, wk, bk = jax.random.split(key, 3)
            # Match torch.nn.Linear default init: U(-1/sqrt(fan_in), 1/sqrt(fan_in))
            bound = 1.0 / (fan_in ** 0.5)
            w = jax.random.uniform(wk, (fan_in, fan_out), jnp.float32, -bound, bound)
            b = jax.random.uniform(bk, (1, fan_out), jnp.float32, -bound, bound)
            self.params.append((w, b))
            w_packed = w_packed.at[i, :fan_in, :fan_out].set(w)
            b_packed = b_packed.at[i, :fan_out].set(b[0])

        # bf16 weights (MXU-native, half the DMA bytes); biases stay f32.
        self.w_packed = w_packed.astype(jnp.bfloat16)
        self.b_packed = b_packed

    def __call__(self, x):
        # Layout plumbing only: present a lane-dense (B, 128k) slab to the
        # kernel, slice the real output columns back out afterwards.
        in_features = x.shape[1]
        x_pad = jnp.pad(x, ((0, 0), (0, self.d_pad - in_features)))
        y_pad = fused_mlp(x_pad, self.w_packed, self.b_packed, self.n_layers)
        return y_pad[:, :self.output_size]


if __name__ == "__main__":
    key = jax.random.PRNGKey(0)
    k_model, k_x = jax.random.split(key)

    batch = 8
    input_size = 32
    hidden_sizes = [64, 48]
    output_size = 16

    model = CustomModelPallas(input_size, output_size, hidden_sizes, k_model)
    x = jax.random.normal(k_x, (batch, input_size), jnp.float32)

    y = model(x)
    jax.block_until_ready(y)

    # Pure-JAX reference with IDENTICAL precision handling
    # (bf16 weights / bf16 activations into the dot, f32 accumulation,
    #  f32 bias add + ReLU) so a tight tolerance remains meaningful.
    ref = x
    n = len(model.params)
    for i, (w, b) in enumerate(model.params):
        ref = jnp.dot(ref.astype(jnp.bfloat16), w.astype(jnp.bfloat16),
                      preferred_element_type=jnp.float32) + b
        if i < n - 1:
            ref = jnp.maximum(ref, 0.0)

    assert y.shape == (batch, output_size)
    assert jnp.allclose(y, ref, atol=1e-3, rtol=1e-3), float(jnp.max(jnp.abs(y - ref)))
    print("KERNEL_OK")
</pallas_src>

<mosaic_0001>
module attributes {stable_mosaic.version = 11 : i64} {
  func.func @_fused_mlp_kernel(%arg0: memref<8x128xf32, #tpu.memory_space<vmem>>, %arg1: memref<3x128x128xbf16, #tpu.memory_space<vmem>>, %arg2: memref<3x128xf32, #tpu.memory_space<vmem>>, %arg3: memref<8x128xf32, #tpu.memory_space<vmem>>) attributes {dimension_semantics = [], scalar_prefetch = 0 : i64, scratch_operands = 0 : i64, tpu.core_type = #tpu.core_type<tc>} {
    %c0 = arith.constant 0 : index
    %c0_0 = arith.constant 0 : index
    %0 = vector.load %arg0[%c0, %c0_0] : memref<8x128xf32, #tpu.memory_space<vmem>>, vector<8x128xf32>
    %c0_1 = arith.constant 0 : index
    %c0_2 = arith.constant 0 : index
    %c0_3 = arith.constant 0 : index
    %1 = vector.load %arg1[%c0_1, %c0_2, %c0_3] : memref<3x128x128xbf16, #tpu.memory_space<vmem>>, vector<1x128x128xbf16>
    %2 = vector.shape_cast %1 : vector<1x128x128xbf16> to vector<128x128xbf16>
    %c0_4 = arith.constant 0 : index
    %c0_5 = arith.constant 0 : index
    %3 = vector.load %arg2[%c0_4, %c0_5] : memref<3x128xf32, #tpu.memory_space<vmem>>, vector<1x128xf32>
    %4 = arith.truncf %0 : vector<8x128xf32> to vector<8x128xbf16>
    %cst = arith.constant dense<0.000000e+00> : vector<8x128xf32>
    %5 = tpu.matmul %4, %2, %cst {dimension_numbers = #tpu.dot_dimension_numbers<[1], [0], [0], [1], [0, 0, 1, 1], [], []>} : vector<8x128xbf16>, vector<128x128xbf16>, vector<8x128xf32> -> vector<8x128xf32>
    %6 = vector.broadcast %3 : vector<1x128xf32> to vector<8x128xf32>
    %7 = arith.addf %5, %6 : vector<8x128xf32>
    %cst_6 = arith.constant 0.000000e+00 : f32
    %8 = vector.broadcast %cst_6 : f32 to vector<8x128xf32>
    %9 = arith.maximumf %7, %8 : vector<8x128xf32>
    %c1 = arith.constant 1 : index
    %c0_7 = arith.constant 0 : index
    %c0_8 = arith.constant 0 : index
    %10 = vector.load %arg1[%c1, %c0_7, %c0_8] : memref<3x128x128xbf16, #tpu.memory_space<vmem>>, vector<1x128x128xbf16>
    %11 = vector.shape_cast %10 : vector<1x128x128xbf16> to vector<128x128xbf16>
    %c1_9 = arith.constant 1 : index
    %c0_10 = arith.constant 0 : index
    %12 = vector.load %arg2[%c1_9, %c0_10] : memref<3x128xf32, #tpu.memory_space<vmem>>, vector<1x128xf32>
    %13 = arith.truncf %9 : vector<8x128xf32> to vector<8x128xbf16>
    %cst_11 = arith.constant dense<0.000000e+00> : vector<8x128xf32>
    %14 = tpu.matmul %13, %11, %cst_11 {dimension_numbers = #tpu.dot_dimension_numbers<[1], [0], [0], [1], [0, 0, 1, 1], [], []>} : vector<8x128xbf16>, vector<128x128xbf16>, vector<8x128xf32> -> vector<8x128xf32>
    %15 = vector.broadcast %12 : vector<1x128xf32> to vector<8x128xf32>
    %16 = arith.addf %14, %15 : vector<8x128xf32>
    %cst_12 = arith.constant 0.000000e+00 : f32
    %17 = vector.broadcast %cst_12 : f32 to vector<8x128xf32>
    %18 = arith.maximumf %16, %17 : vector<8x128xf32>
    %c2 = arith.constant 2 : index
    %c0_13 = arith.constant 0 : index
    %c0_14 = arith.constant 0 : index
    %19 = vector.load %arg1[%c2, %c0_13, %c0_14] : memref<3x128x128xbf16, #tpu.memory_space<vmem>>, vector<1x128x128xbf16>
    %20 = vector.shape_cast %19 : vector<1x128x128xbf16> to vector<128x128xbf16>
    %c2_15 = arith.constant 2 : index
    %c0_16 = arith.constant 0 : index
    %21 = vector.load %arg2[%c2_15, %c0_16] : memref<3x128xf32, #tpu.memory_space<vmem>>, vector<1x128xf32>
    %22 = arith.truncf %18 : vector<8x128xf32> to vector<8x128xbf16>
    %cst_17 = arith.constant dense<0.000000e+00> : vector<8x128xf32>
    %23 = tpu.matmul %22, %20, %cst_17 {dimension_numbers = #tpu.dot_dimension_numbers<[1], [0], [0], [1], [0, 0, 1, 1], [], []>} : vector<8x128xbf16>, vector<128x128xbf16>, vector<8x128xf32> -> vector<8x128xf32>
    %24 = vector.broadcast %21 : vector<1x128xf32> to vector<8x128xf32>
    %25 = arith.addf %23, %24 : vector<8x128xf32>
    %c0_18 = arith.constant 0 : index
    %c0_19 = arith.constant 0 : index
    %26 = vector.load %arg3[%c0_18, %c0_19] : memref<8x128xf32, #tpu.memory_space<vmem>>, vector<8x128xf32>
    tpu.vector_store %arg3[%c0_18, %c0_19], %25 {strides = array<i32>} : memref<8x128xf32, #tpu.memory_space<vmem>>, vector<8x128xf32>,
    return
  }
}

</mosaic_0001>

<llo_original>
// kernel: tpu_custom_call.1
$region0: #{tpu_custom_call.1}
  #allocation0 [shape = 'u32[]', space=smem, size = 0x4, offset = 0x4, fixed_abs, tag = 'smem constant byte address 0x4 - core index']
  #allocation1 [shape = 'u32[144,128]{1,0:T(1,128)}', space=vmem, size = 0x12000, scoped, tag = 'internal scratch']
  %s0 = inlined_call_operand.hbm [shape: f32[8,128], index: 0, kind: input, shape index: {}]
  %s1 = inlined_call_operand.hbm [shape: bf16[3,128,128], index: 1, kind: input, shape index: {}]
  %s2 = inlined_call_operand.vmem [shape: f32[3,128], index: 2, kind: input, shape index: {}]
  %s3 = inlined_call_operand.hbm [shape: f32[8,128], index: 3, kind: output, shape index: {}]
  %s4 = sld [smem:[#allocation0]]
  $region30: #{tpu_custom_call.1} parent=0
    _
  %s6 = ssub.s32 1, %s4
  %s7 = scalar_select 0, %s6, %s4
  $region1: #{tpu_custom_call.1} parent=0
    #allocation2 [shape = 'u8[4096]{0}', space=vmem, size = 0x1000, scoped, tag = 'input window, operand 0, single buffered']
    #allocation3 [shape = 's32[1]{0}', space=sflag, size = 0x4, scoped, tag = 'scoped memory for tpu_custom_call.1']
    #allocation4 [shape = 's32[1]{0}', space=sflag, size = 0x4, scoped, tag = 'scoped memory for tpu_custom_call.1']
    #allocation5 [shape = 'u8[98304]{0}', space=vmem, size = 0x18000, scoped, tag = 'input window, operand 1, single buffered']
    #allocation6 [shape = 's32[1]{0}', space=sflag, size = 0x4, scoped, tag = 'scoped memory for tpu_custom_call.1']
    #allocation7 [shape = 'u8[4096]{0}', space=vmem, size = 0x1000, scoped, tag = 'output window, operand 0, single buffered']
    %8 = vsyncpa [#allocation3], 0
    %9 = vsyncpa [#allocation6], 0
    %10 = vsyncpa [#allocation4], 0
    // Predicated region
    $region2: #{tpu_custom_call.1} parent=1 // pred_check
      _
    $region3: #{tpu_custom_call.1} parent=1 // pred_check_branch
      %12 = sbr.rel (0) target = $region5
    $region4: #{tpu_custom_call.1} parent=1 // pred_region
      %s14 = ssub.s32 128, 128
      %15 = vsyncadd [#allocation3], %s14
      %s17 = sshll.u32 [#allocation2], 4
      %s18 = int_to_ptr.vmem [resolvable:$true] %s17
      %20 = dma.hbm_to_vmem [thread:$0]  %s0, 128, %s18, [#allocation3]
    $region5: #{tpu_custom_call.1} parent=1 // pred_fallthru
      _
    // Predicated region
    $region6: #{tpu_custom_call.1} parent=1 // pred_check
      _
    $region7: #{tpu_custom_call.1} parent=1 // pred_check_branch
      %22 = sbr.rel (0) target = $region9
    $region8: #{tpu_custom_call.1} parent=1 // pred_region
      %s24 = ssub.s32 3072, 3072
      %25 = vsyncadd [#allocation6], %s24
      %s26 = sshll.u32 [#allocation5], 4
      %s27 = int_to_ptr.vmem [resolvable:$true] %s26
      %32 = dma.hbm_to_vmem [thread:$0]  %s1, 3072, %s27, [#allocation6], 64, 64, 4
    $region9: #{tpu_custom_call.1} parent=1 // pred_fallthru
      _
    // Predicated region
    $region10: #{tpu_custom_call.1} parent=1 // pred_check
      _
    $region11: #{tpu_custom_call.1} parent=1 // pred_check_branch
      %34 = sbr.rel (0) target = $region13
    $region12: #{tpu_custom_call.1} parent=1 // pred_region
      _
    $region13: #{tpu_custom_call.1} parent=1 // pred_fallthru
      _
    // Predicated region
    $region14: #{tpu_custom_call.1} parent=1 // pred_check
      _
    $region15: #{tpu_custom_call.1} parent=1 // pred_check_branch
      %36 = sbr.rel (0) target = $region17
    $region16: #{tpu_custom_call.1} parent=1 // pred_region
      %37 = dma.done [#allocation3], 128
    $region17: #{tpu_custom_call.1} parent=1 // pred_fallthru
      _
    // Predicated region
    $region18: #{tpu_custom_call.1} parent=1 // pred_check
      _
    $region19: #{tpu_custom_call.1} parent=1 // pred_check_branch
      %39 = sbr.rel (0) target = $region21
    $region20: #{tpu_custom_call.1} parent=1 // pred_region
      %40 = dma.done [#allocation6], 3072
    $region21: #{tpu_custom_call.1} parent=1 // pred_fallthru
      _
    %v42 = vld [vmem:[#allocation2] sm:$0xff]
    %v43 = vld [vmem:[#allocation5] sm:$0xf]
    %v44 = vld [vmem:[#allocation5 + $0x4] sm:$0xf]
    %v45 = vld [vmem:[#allocation5 + $0x8] sm:$0xf]
    %v46 = vld [vmem:[#allocation5 + $0xc] sm:$0xf]
    %v47 = vld [vmem:[#allocation5 + $0x10] sm:$0xf]
    %v48 = vld [vmem:[#allocation5 + $0x14] sm:$0xf]
    %v49 = vld [vmem:[#allocation5 + $0x18] sm:$0xf]
    %v50 = vld [vmem:[#allocation5 + $0x1c] sm:$0xf]
    %v51 = vld [vmem:[#allocation5 + $0x20] sm:$0xf]
    %v52 = vld [vmem:[#allocation5 + $0x24] sm:$0xf]
    %v53 = vld [vmem:[#allocation5 + $0x28] sm:$0xf]
    %v54 = vld [vmem:[#allocation5 + $0x2c] sm:$0xf]
    %v55 = vld [vmem:[#allocation5 + $0x30] sm:$0xf]
    %v56 = vld [vmem:[#allocation5 + $0x34] sm:$0xf]
    %v57 = vld [vmem:[#allocation5 + $0x38] sm:$0xf]
    %v58 = vld [vmem:[#allocation5 + $0x3c] sm:$0xf]
    %v59 = vld [vmem:[%s2] sm:$0x1]
    %v60 = vpack.c.bf16 %v42, %v42
    %v61 = vlaneseq
    %v62 = vshrl.u32 %v61, 7
    %v63 = vsub.s32 0, %v62
    %v64 = vrot.slane %v59, %v63
    %v81 = vunpack.c.l.b16 %v43
    %v82 = vunpack.c.l.b16 %v44
    %v83 = vunpack.c.l.b16 %v45
    %v84 = vunpack.c.l.b16 %v46
    %v85 = vunpack.c.l.b16 %v47
    %v86 = vunpack.c.l.b16 %v48
    %v87 = vunpack.c.l.b16 %v49
    %v88 = vunpack.c.l.b16 %v50
    %v89 = vunpack.c.l.b16 %v51
    %v90 = vunpack.c.l.b16 %v52
    %v91 = vunpack.c.l.b16 %v53
    %v92 = vunpack.c.l.b16 %v54
    %v93 = vunpack.c.l.b16 %v55
    %v94 = vunpack.c.l.b16 %v56
    %v95 = vunpack.c.l.b16 %v57
    %v96 = vunpack.c.l.b16 %v58
    %v97 = vpack.c.b16 %v82, %v81
    %v98 = vpack.c.b16 %v84, %v83
    %v99 = vpack.c.b16 %v86, %v85
    %v100 = vpack.c.b16 %v88, %v87
    %v101 = vpack.c.b16 %v90, %v89
    %v102 = vpack.c.b16 %v92, %v91
    %v103 = vpack.c.b16 %v94, %v93
    %v104 = vpack.c.b16 %v96, %v95
    %113 = vmatprep.subr.bf16.mxu0 0
    %114 = vmatpush1.bf16.msra.mxu0 %v97
    %115 = vmatprep.subr.bf16.mxu0 0
    %116 = vmatpush1.bf16.msra.mxu0 %v98
    %117 = vmatprep.subr.bf16.mxu0 0
    %118 = vmatpush1.bf16.msra.mxu0 %v99
    %119 = vmatprep.subr.bf16.mxu0 0
    %120 = vmatpush1.bf16.msra.mxu0 %v100
    %121 = vmatprep.subr.bf16.mxu0 0
    %122 = vmatpush1.bf16.msra.mxu0 %v101
    %123 = vmatprep.subr.bf16.mxu0 0
    %124 = vmatpush1.bf16.msra.mxu0 %v102
    %125 = vmatprep.subr.bf16.mxu0 0
    %126 = vmatpush1.bf16.msra.mxu0 %v103
    %127 = vmatprep.subr.bf16.mxu0 0
    %128 = vmatpush1.bf16.msra.mxu0 %v104
    %129 = vmatprep.subr.bf16.mxu0 0
    %130 = vmatpush1.bf16.msra.mxu0 0
    %131 = vmatprep.subr.bf16.mxu0 0
    %132 = vmatpush1.bf16.msra.mxu0 0
    %133 = vmatprep.subr.bf16.mxu0 0
    %134 = vmatpush1.bf16.msra.mxu0 0
    %135 = vmatprep.subr.bf16.mxu0 0
    %136 = vmatpush1.bf16.msra.mxu0 0
    %137 = vmatprep.subr.bf16.mxu0 0
    %138 = vmatpush1.bf16.msra.mxu0 0
    %139 = vmatprep.subr.bf16.mxu0 0
    %140 = vmatpush1.bf16.msra.mxu0 0
    %141 = vmatprep.subr.bf16.mxu0 0
    %142 = vmatpush1.bf16.msra.mxu0 0
    %143 = vmatprep.subr.bf16.mxu0 0
    %144 = vmatpush1.bf16.msra.mxu0 0
    %145 = vmatprep.mubr.bf16.mxu0 0
    %146 = vmatmul.mubr.bf16.gmra.mrb[0].mxu0 %v60
    %v147 = vpop.f32.mrb[0].mxu0
    %v148 = vadd.f32 %v64, %v147
    %v149 = vpop.f32.mrb[0].mxu0
    %v150 = vpop.f32.mrb[0].mxu0
    %v151 = vpop.f32.mrb[0].mxu0
    %152 = vdwg.mxu0
    %v153 = vmax.f32 %v148, 0.0
    %s154 = scalar_lea.vmem [#allocation5], 64
    %v155 = vld [vmem:[%s154] sm:$0xf]
    %v156 = vld [vmem:[%s154 + $0x4] sm:$0xf]
    %v157 = vld [vmem:[%s154 + $0x8] sm:$0xf]
    %v158 = vld [vmem:[%s154 + $0xc] sm:$0xf]
    %v159 = vld [vmem:[%s154 + $0x10] sm:$0xf]
    %v160 = vld [vmem:[%s154 + $0x14] sm:$0xf]
    %v161 = vld [vmem:[%s154 + $0x18] sm:$0xf]
    %v162 = vld [vmem:[%s154 + $0x1c] sm:$0xf]
    %v163 = vld [vmem:[%s154 + $0x20] sm:$0xf]
    %v164 = vld [vmem:[%s154 + $0x24] sm:$0xf]
    %v165 = vld [vmem:[%s154 + $0x28] sm:$0xf]
    %v166 = vld [vmem:[%s154 + $0x2c] sm:$0xf]
    %v167 = vld [vmem:[%s154 + $0x30] sm:$0xf]
    %v168 = vld [vmem:[%s154 + $0x34] sm:$0xf]
    %v169 = vld [vmem:[%s154 + $0x38] sm:$0xf]
    %v170 = vld [vmem:[%s154 + $0x3c] sm:$0xf]
    %v171 = vld [vmem:[%s2 + $0x1] sm:$0x1]
    %v172 = vpack.c.bf16 %v153, %v153
    %v173 = vlaneseq
    %v174 = vshrl.u32 %v173, 7
    %v175 = vsub.s32 0, %v174
    %v176 = vrot.slane %v171, %v175
    %v193 = vunpack.c.l.b16 %v155
    %v194 = vunpack.c.l.b16 %v156
    %v195 = vunpack.c.l.b16 %v157
    %v196 = vunpack.c.l.b16 %v158
    %v197 = vunpack.c.l.b16 %v159
    %v198 = vunpack.c.l.b16 %v160
    %v199 = vunpack.c.l.b16 %v161
    %v200 = vunpack.c.l.b16 %v162
    %v201 = vunpack.c.l.b16 %v163
    %v202 = vunpack.c.l.b16 %v164
    %v203 = vunpack.c.l.b16 %v165
    %v204 = vunpack.c.l.b16 %v166
    %v205 = vunpack.c.l.b16 %v167
    %v206 = vunpack.c.l.b16 %v168
    %v207 = vunpack.c.l.b16 %v169
    %v208 = vunpack.c.l.b16 %v170
    %v209 = vpack.c.b16 %v194, %v193
    %v210 = vpack.c.b16 %v196, %v195
    %v211 = vpack.c.b16 %v198, %v197
    %v212 = vpack.c.b16 %v200, %v199
    %v213 = vpack.c.b16 %v202, %v201
    %v214 = vpack.c.b16 %v204, %v203
    %v215 = vpack.c.b16 %v206, %v205
    %v216 = vpack.c.b16 %v208, %v207
    %225 = vmatprep.subr.bf16.mxu0 0
    %226 = vmatpush1.bf16.msra.mxu0 %v209
    %227 = vmatprep.subr.bf16.mxu0 0
    %228 = vmatpush1.bf16.msra.mxu0 %v210
    %229 = vmatprep.subr.bf16.mxu0 0
    %230 = vmatpush1.bf16.msra.mxu0 %v211
    %231 = vmatprep.subr.bf16.mxu0 0
    %232 = vmatpush1.bf16.msra.mxu0 %v212
    %233 = vmatprep.subr.bf16.mxu0 0
    %234 = vmatpush1.bf16.msra.mxu0 %v213
    %235 = vmatprep.subr.bf16.mxu0 0
    %236 = vmatpush1.bf16.msra.mxu0 %v214
    %237 = vmatprep.subr.bf16.mxu0 0
    %238 = vmatpush1.bf16.msra.mxu0 %v215
    %239 = vmatprep.subr.bf16.mxu0 0
    %240 = vmatpush1.bf16.msra.mxu0 %v216
    %241 = vmatprep.subr.bf16.mxu0 0
    %242 = vmatpush1.bf16.msra.mxu0 0
    %243 = vmatprep.subr.bf16.mxu0 0
    %244 = vmatpush1.bf16.msra.mxu0 0
    %245 = vmatprep.subr.bf16.mxu0 0
    %246 = vmatpush1.bf16.msra.mxu0 0
    %247 = vmatprep.subr.bf16.mxu0 0
    %248 = vmatpush1.bf16.msra.mxu0 0
    %249 = vmatprep.subr.bf16.mxu0 0
    %250 = vmatpush1.bf16.msra.mxu0 0
    %251 = vmatprep.subr.bf16.mxu0 0
    %252 = vmatpush1.bf16.msra.mxu0 0
    %253 = vmatprep.subr.bf16.mxu0 0
    %254 = vmatpush1.bf16.msra.mxu0 0
    %255 = vmatprep.subr.bf16.mxu0 0
    %256 = vmatpush1.bf16.msra.mxu0 0
    %257 = vmatprep.mubr.bf16.mxu0 0
    %258 = vmatmul.mubr.bf16.gmra.mrb[0].mxu0 %v172
    %v259 = vpop.f32.mrb[0].mxu0
    %v260 = vadd.f32 %v176, %v259
    %v261 = vpop.f32.mrb[0].mxu0
    %v262 = vpop.f32.mrb[0].mxu0
    %v263 = vpop.f32.mrb[0].mxu0
    %264 = vdwg.mxu0
    %v265 = vmax.f32 %v260, 0.0
    %s266 = scalar_lea.vmem [#allocation5], 128
    %v267 = vld [vmem:[%s266] sm:$0xf]
    %v268 = vld [vmem:[%s266 + $0x4] sm:$0xf]
    %v269 = vld [vmem:[%s266 + $0x8] sm:$0xf]
    %v270 = vld [vmem:[%s266 + $0xc] sm:$0xf]
    %v271 = vld [vmem:[%s266 + $0x10] sm:$0xf]
    %v272 = vld [vmem:[%s266 + $0x14] sm:$0xf]
    %v273 = vld [vmem:[%s266 + $0x18] sm:$0xf]
    %v274 = vld [vmem:[%s266 + $0x1c] sm:$0xf]
    %v275 = vld [vmem:[%s266 + $0x20] sm:$0xf]
    %v276 = vld [vmem:[%s266 + $0x24] sm:$0xf]
    %v277 = vld [vmem:[%s266 + $0x28] sm:$0xf]
    %v278 = vld [vmem:[%s266 + $0x2c] sm:$0xf]
    %v279 = vld [vmem:[%s266 + $0x30] sm:$0xf]
    %v280 = vld [vmem:[%s266 + $0x34] sm:$0xf]
    %v281 = vld [vmem:[%s266 + $0x38] sm:$0xf]
    %v282 = vld [vmem:[%s266 + $0x3c] sm:$0xf]
    %v283 = vld [vmem:[%s2 + $0x2] sm:$0x1]
    %v284 = vpack.c.bf16 %v265, %v265
    %v285 = vlaneseq
    %v286 = vshrl.u32 %v285, 7
    %v287 = vsub.s32 0, %v286
    %v288 = vrot.slane %v283, %v287
    %v305 = vunpack.c.l.b16 %v267
    %v306 = vunpack.c.l.b16 %v268
    %v307 = vunpack.c.l.b16 %v269
    %v308 = vunpack.c.l.b16 %v270
    %v309 = vunpack.c.l.b16 %v271
    %v310 = vunpack.c.l.b16 %v272
    %v311 = vunpack.c.l.b16 %v273
    %v312 = vunpack.c.l.b16 %v274
    %v313 = vunpack.c.l.b16 %v275
    %v314 = vunpack.c.l.b16 %v276
    %v315 = vunpack.c.l.b16 %v277
    %v316 = vunpack.c.l.b16 %v278
    %v317 = vunpack.c.l.b16 %v279
    %v318 = vunpack.c.l.b16 %v280
    %v319 = vunpack.c.l.b16 %v281
    %v320 = vunpack.c.l.b16 %v282
    %v321 = vpack.c.b16 %v306, %v305
    %v322 = vpack.c.b16 %v308, %v307
    %v323 = vpack.c.b16 %v310, %v309
    %v324 = vpack.c.b16 %v312, %v311
    %v325 = vpack.c.b16 %v314, %v313
    %v326 = vpack.c.b16 %v316, %v315
    %v327 = vpack.c.b16 %v318, %v317
    %v328 = vpack.c.b16 %v320, %v319
    %337 = vmatprep.subr.bf16.mxu0 0
    %338 = vmatpush1.bf16.msra.mxu0 %v321
    %339 = vmatprep.subr.bf16.mxu0 0
    %340 = vmatpush1.bf16.msra.mxu0 %v322
    %341 = vmatprep.subr.bf16.mxu0 0
    %342 = vmatpush1.bf16.msra.mxu0 %v323
    %343 = vmatprep.subr.bf16.mxu0 0
    %344 = vmatpush1.bf16.msra.mxu0 %v324
    %345 = vmatprep.subr.bf16.mxu0 0
    %346 = vmatpush1.bf16.msra.mxu0 %v325
    %347 = vmatprep.subr.bf16.mxu0 0
    %348 = vmatpush1.bf16.msra.mxu0 %v326
    %349 = vmatprep.subr.bf16.mxu0 0
    %350 = vmatpush1.bf16.msra.mxu0 %v327
    %351 = vmatprep.subr.bf16.mxu0 0
    %352 = vmatpush1.bf16.msra.mxu0 %v328
    %353 = vmatprep.subr.bf16.mxu0 0
    %354 = vmatpush1.bf16.msra.mxu0 0
    %355 = vmatprep.subr.bf16.mxu0 0
    %356 = vmatpush1.bf16.msra.mxu0 0
    %357 = vmatprep.subr.bf16.mxu0 0
    %358 = vmatpush1.bf16.msra.mxu0 0
    %359 = vmatprep.subr.bf16.mxu0 0
    %360 = vmatpush1.bf16.msra.mxu0 0
    %361 = vmatprep.subr.bf16.mxu0 0
    %362 = vmatpush1.bf16.msra.mxu0 0
    %363 = vmatprep.subr.bf16.mxu0 0
    %364 = vmatpush1.bf16.msra.mxu0 0
    %365 = vmatprep.subr.bf16.mxu0 0
    %366 = vmatpush1.bf16.msra.mxu0 0
    %367 = vmatprep.subr.bf16.mxu0 0
    %368 = vmatpush1.bf16.msra.mxu0 0
    %369 = vmatprep.mubr.bf16.mxu0 0
    %370 = vmatmul.mubr.bf16.gmra.mrb[0].mxu0 %v284
    %v371 = vpop.f32.mrb[0].mxu0
    %v372 = vadd.f32 %v288, %v371
    %v373 = vpop.f32.mrb[0].mxu0
    %v374 = vpop.f32.mrb[0].mxu0
    %v375 = vpop.f32.mrb[0].mxu0
    %376 = vdwg.mxu0
    %377 = vst [vmem:[#allocation7] sm:$0xff] %v372
    // Predicated region
    $region22: #{tpu_custom_call.1} parent=1 // pred_check
      _
    $region23: #{tpu_custom_call.1} parent=1 // pred_check_branch
      %379 = sbr.rel (0) target = $region25
    $region24: #{tpu_custom_call.1} parent=1 // pred_region
      %s381 = ssub.s32 128, 128
      %382 = vsyncadd [#allocation4], %s381
      %s384 = sshll.u32 [#allocation7], 4
      %s385 = int_to_ptr.vmem [resolvable:$true] %s384
      %387 = dma.vmem_to_hbm [thread:$0]  %s385, 128, %s3, [#allocation4]
    $region25: #{tpu_custom_call.1} parent=1 // pred_fallthru
      _
    // Predicated region
    $region26: #{tpu_custom_call.1} parent=1 // pred_check
      _
    $region27: #{tpu_custom_call.1} parent=1 // pred_check_branch
      %389 = sbr.rel (0) target = $region29
    $region28: #{tpu_custom_call.1} parent=1 // pred_region
      %390 = dma.done [#allocation4], 128
    $region29: #{tpu_custom_call.1} parent=1 // pred_fallthru
      _
    %391 = vsyncpa [#allocation3], 1
    %392 = vsyncpa [#allocation6], 1
    %393 = vsyncpa [#allocation4], 1

</llo_original>
